<compile_context>
chip_gen: v7x
topology: tpu7x:2x2x1
jax: 0.10.0
libtpu: 0.0.40
codegen_flags: <defaults>
</compile_context>

<pallas_src>
import math
from itertools import product

import numpy as np

import jax
import jax.numpy as jnp
from jax.experimental import pallas as pl
from jax.experimental.pallas import tpu as pltpu

# Constants hardcoded inside _DefaultBox.forward (SSD300 recipe).
STEPS = [8, 16, 32, 64, 100, 300]
MIN_SIZES = [30, 60, 111, 162, 213, 264]
MAX_SIZES = [60, 111, 162, 213, 264, 315]
ASPECT_RATIOS = [[2], [2, 3], [2, 3], [2, 3], [2], [2]]

# Rows per copy tile when the table is very large (must be a multiple of 8).
_ROW_BLOCK = 2048


def _dbox_table_np(fmap_sizes, img_width=300, clip=True):
    """Exact numpy transcription of _DefaultBox.forward.

    NOTE: the torch code iterates product(range(fmap_h), repeat=2), i.e. both
    spatial loops use the feature-map height (square maps assumed)."""
    mean = []
    for k, (fh, fw) in enumerate(fmap_sizes):
        for i, j in product(range(fh), repeat=2):
            f_k = img_width / STEPS[k]
            cx = (j + 0.5) / f_k
            cy = (i + 0.5) / f_k
            s_k = MIN_SIZES[k] / img_width
            mean += [cx, cy, s_k, s_k]
            s_kp = math.sqrt(s_k * (MAX_SIZES[k] / img_width))
            mean += [cx, cy, s_kp, s_kp]
            for ar in ASPECT_RATIOS[k]:
                r = math.sqrt(ar)
                mean += [cx, cy, s_k * r, s_k / r]
                mean += [cx, cy, s_k / r, s_k * r]
    out = np.asarray(mean, dtype=np.float32).reshape(-1, 4)
    if clip:  # torch .clamp_(max=1, min=0)
        out = np.clip(out, 0.0, 1.0)
    return out


def _copy_kernel(table_ref, o_ref):
    # forward() is a constant generator: the kernel's only job is to
    # materialize the precomputed prior-box table on device.
    o_ref[...] = table_ref[...]


def make_default_box_fn(fmap_sizes, img_width=300, clip=True):
    """Builds a callable producing the (N, 4) default-box table via a Pallas
    TPU kernel reduced to a (row-tiled) whole-block copy of a host-side
    precomputed constant (review item 1), emitted directly in torch (N, 4)
    layout so no wrapper transpose/slice is needed (review item 7)."""
    table_np = _dbox_table_np(fmap_sizes, img_width=img_width, clip=clip)
    N = table_np.shape[0]
    table = jnp.asarray(table_np)  # (N, 4) float32, already clipped

    # Whole-array block for SSD-scale tables; tile rows only if very large so
    # the lane-padded VMEM tile stays well under the scoped-VMEM default on
    # all generations (incl. v5e's 16 MiB default).
    if N <= _ROW_BLOCK:
        r_blk, grid = N, (1,)
    else:
        r_blk, grid = _ROW_BLOCK, (pl.cdiv(N, _ROW_BLOCK),)

    fn = pl.pallas_call(
        _copy_kernel,
        out_shape=jax.ShapeDtypeStruct((N, 4), jnp.float32),
        grid=grid,
        in_specs=[pl.BlockSpec((r_blk, 4), lambda g: (g, 0))],
        out_specs=pl.BlockSpec((r_blk, 4), lambda g: (g, 0)),
        compiler_params=pltpu.CompilerParams(
            dimension_semantics=("arbitrary",)),
        # Accurate (tiny) cost hint so XLA overlaps this launch-bound call.
        cost_estimate=pl.CostEstimate(
            flops=0, transcendentals=0, bytes_accessed=2 * N * 4 * 4),
    )

    def default_boxes():
        # Kernel output is already the torch (N, 4) layout — no wrapper
        # transpose / slice / reshape (removes the extra XLA launch).
        return fn(table)

    return default_boxes, N


if __name__ == "__main__":
    # forward() itself takes no tensor inputs; the dummy NCHW image below only
    # stands in for the backbone pass in build() that determines fmap sizes.
    key = jax.random.PRNGKey(0)
    x = jax.random.normal(key, (1, 3, 32, 32), dtype=jnp.float32)  # NCHW dummy
    s = x.shape[2]
    fmap_sizes = [
        [s // 4, s // 4],    # 8x8
        [s // 8, s // 8],    # 4x4
        [s // 16, s // 16],  # 2x2
        [s // 16, s // 16],  # 2x2
        [s // 32, s // 32],  # 1x1
        [s // 32, s // 32],  # 1x1
    ]

    default_boxes, N = make_default_box_fn(fmap_sizes, img_width=300, clip=True)
    dboxes = jax.block_until_ready(default_boxes())

    ref = _dbox_table_np(fmap_sizes, img_width=300, clip=True)
    assert dboxes.shape == (N, 4) and dboxes.dtype == jnp.float32
    np.testing.assert_allclose(np.asarray(dboxes), ref, rtol=1e-6, atol=1e-7)
    print("KERNEL_OK")
</pallas_src>

<mosaic_0001>
module attributes {stable_mosaic.version = 11 : i64} {
  func.func @_copy_kernel(%arg0: i32, %arg1: memref<408x4xf32, #tpu.memory_space<vmem>>, %arg2: memref<408x4xf32, #tpu.memory_space<vmem>>) attributes {dimension_semantics = [#tpu.dimension_semantics<arbitrary>], iteration_bounds = array<i64: 1>, scalar_prefetch = 0 : i64, scratch_operands = 0 : i64, tpu.core_type = #tpu.core_type<tc>, window_params = [{transform_indices = @transform_0, window_bounds = array<i64: 408, 4>}, {transform_indices = @transform_1, window_bounds = array<i64: 408, 4>}]} {
    %c0 = arith.constant 0 : index
    %c0_0 = arith.constant 0 : index
    %0 = vector.load %arg1[%c0, %c0_0] : memref<408x4xf32, #tpu.memory_space<vmem>>, vector<408x4xf32>
    %c0_1 = arith.constant 0 : index
    %c0_2 = arith.constant 0 : index
    %1 = vector.load %arg2[%c0_1, %c0_2] : memref<408x4xf32, #tpu.memory_space<vmem>>, vector<408x4xf32>
    tpu.vector_store %arg2[%c0_1, %c0_2], %0 {strides = array<i32>} : memref<408x4xf32, #tpu.memory_space<vmem>>, vector<408x4xf32>,
    return
  }
  func.func @transform_0(%arg0: i32) -> (i32, i32) {
    %c0_i32 = arith.constant 0 : i32
    %c0_i32_0 = arith.constant 0 : i32
    return %arg0, %c0_i32 : i32, i32
  }
  func.func @transform_1(%arg0: i32) -> (i32, i32) {
    %c0_i32 = arith.constant 0 : i32
    %c0_i32_0 = arith.constant 0 : i32
    return %arg0, %c0_i32 : i32, i32
  }
}

</mosaic_0001>

<llo_original>
// kernel: tpu_custom_call.1
$region0: #{tpu_custom_call.1}
  #allocation0 [shape = 'u32[]', space=smem, size = 0x4, offset = 0x4, fixed_abs, tag = 'smem constant byte address 0x4 - core index']
  #allocation1 [shape = 'u32[144,128]{1,0:T(1,128)}', space=vmem, size = 0x12000, scoped, tag = 'internal scratch']
  %s0 = inlined_call_operand.vmem [shape: f32[408,4], index: 0, kind: input, shape index: {}]
  %s1 = inlined_call_operand.vmem [shape: f32[408,4], index: 1, kind: output, shape index: {}]
  %s2 = sld [smem:[#allocation0]]
  $region14: #{tpu_custom_call.1} parent=0
    _
  %s4 = ssub.s32 1, %s2
  %s5 = scalar_select 0, %s4, %s2
  // Predicated region
  $region2: #{tpu_custom_call.1} parent=0 // pred_check
    _
  $region3: #{tpu_custom_call.1} parent=0 // pred_check_branch
    %7 = sbr.rel (0) target = $region5
  $region4: #{tpu_custom_call.1} parent=0 // pred_region
    _
  $region5: #{tpu_custom_call.1} parent=0 // pred_fallthru
    _
  %v8 = vld [vmem:[%s0] sm:$0xff]
  %v9 = vld [vmem:[%s0 + $0x8] sm:$0xff]
  %v10 = vld [vmem:[%s0 + $0x10] sm:$0xff]
  %v11 = vld [vmem:[%s0 + $0x18] sm:$0xff]
  %v12 = vld [vmem:[%s0 + $0x20] sm:$0xff]
  %v13 = vld [vmem:[%s0 + $0x28] sm:$0xff]
  %v14 = vld [vmem:[%s0 + $0x30] sm:$0xff]
  %v15 = vld [vmem:[%s0 + $0x38] sm:$0xff]
  %v16 = vld [vmem:[%s0 + $0x40] sm:$0xff]
  %v17 = vld [vmem:[%s0 + $0x48] sm:$0xff]
  %v18 = vld [vmem:[%s0 + $0x50] sm:$0xff]
  %v19 = vld [vmem:[%s0 + $0x58] sm:$0xff]
  %v20 = vld [vmem:[%s0 + $0x60] sm:$0xff]
  %v21 = vld [vmem:[%s0 + $0x68] sm:$0xff]
  %v22 = vld [vmem:[%s0 + $0x70] sm:$0xff]
  %v23 = vld [vmem:[%s0 + $0x78] sm:$0xff]
  %v24 = vld [vmem:[%s0 + $0x80] sm:$0xff]
  %v25 = vld [vmem:[%s0 + $0x88] sm:$0xff]
  %v26 = vld [vmem:[%s0 + $0x90] sm:$0xff]
  %v27 = vld [vmem:[%s0 + $0x98] sm:$0xff]
  %v28 = vld [vmem:[%s0 + $0xa0] sm:$0xff]
  %v29 = vld [vmem:[%s0 + $0xa8] sm:$0xff]
  %v30 = vld [vmem:[%s0 + $0xb0] sm:$0xff]
  %v31 = vld [vmem:[%s0 + $0xb8] sm:$0xff]
  %v32 = vld [vmem:[%s0 + $0xc0] sm:$0xff]
  %v33 = vld [vmem:[%s0 + $0xc8] sm:$0xff]
  %v34 = vld [vmem:[%s0 + $0xd0] sm:$0xff]
  %v35 = vld [vmem:[%s0 + $0xd8] sm:$0xff]
  %v36 = vld [vmem:[%s0 + $0xe0] sm:$0xff]
  %v37 = vld [vmem:[%s0 + $0xe8] sm:$0xff]
  %v38 = vld [vmem:[%s0 + $0xf0] sm:$0xff]
  %v39 = vld [vmem:[%s0 + $0xf8] sm:$0xff]
  %v40 = vld [vmem:[%s0 + $0x100] sm:$0xff]
  %v41 = vld [vmem:[%s0 + $0x108] sm:$0xff]
  %v42 = vld [vmem:[%s0 + $0x110] sm:$0xff]
  %v43 = vld [vmem:[%s0 + $0x118] sm:$0xff]
  %v44 = vld [vmem:[%s0 + $0x120] sm:$0xff]
  %v45 = vld [vmem:[%s0 + $0x128] sm:$0xff]
  %v46 = vld [vmem:[%s0 + $0x130] sm:$0xff]
  %v47 = vld [vmem:[%s0 + $0x138] sm:$0xff]
  %v48 = vld [vmem:[%s0 + $0x140] sm:$0xff]
  %v49 = vld [vmem:[%s0 + $0x148] sm:$0xff]
  %v50 = vld [vmem:[%s0 + $0x150] sm:$0xff]
  %v51 = vld [vmem:[%s0 + $0x158] sm:$0xff]
  %v52 = vld [vmem:[%s0 + $0x160] sm:$0xff]
  %v53 = vld [vmem:[%s0 + $0x168] sm:$0xff]
  %v54 = vld [vmem:[%s0 + $0x170] sm:$0xff]
  %v55 = vld [vmem:[%s0 + $0x178] sm:$0xff]
  %v56 = vld [vmem:[%s0 + $0x180] sm:$0xff]
  %v57 = vld [vmem:[%s0 + $0x188] sm:$0xff]
  %v58 = vld [vmem:[%s0 + $0x190] sm:$0xff]
  %vm59 = vcmask 31744
  %60 = vst.msk [vmem:[%s1] sm:$0xff] %vm59, %v8
  %61 = vst.msk [vmem:[%s1 + $0x8] sm:$0xff] %vm59, %v9
  %62 = vst.msk [vmem:[%s1 + $0x10] sm:$0xff] %vm59, %v10
  %63 = vst.msk [vmem:[%s1 + $0x18] sm:$0xff] %vm59, %v11
  %64 = vst.msk [vmem:[%s1 + $0x20] sm:$0xff] %vm59, %v12
  %65 = vst.msk [vmem:[%s1 + $0x28] sm:$0xff] %vm59, %v13
  %66 = vst.msk [vmem:[%s1 + $0x30] sm:$0xff] %vm59, %v14
  %67 = vst.msk [vmem:[%s1 + $0x38] sm:$0xff] %vm59, %v15
  %68 = vst.msk [vmem:[%s1 + $0x40] sm:$0xff] %vm59, %v16
  %69 = vst.msk [vmem:[%s1 + $0x48] sm:$0xff] %vm59, %v17
  %70 = vst.msk [vmem:[%s1 + $0x50] sm:$0xff] %vm59, %v18
  %71 = vst.msk [vmem:[%s1 + $0x58] sm:$0xff] %vm59, %v19
  %72 = vst.msk [vmem:[%s1 + $0x60] sm:$0xff] %vm59, %v20
  %73 = vst.msk [vmem:[%s1 + $0x68] sm:$0xff] %vm59, %v21
  %74 = vst.msk [vmem:[%s1 + $0x70] sm:$0xff] %vm59, %v22
  %75 = vst.msk [vmem:[%s1 + $0x78] sm:$0xff] %vm59, %v23
  %76 = vst.msk [vmem:[%s1 + $0x80] sm:$0xff] %vm59, %v24
  %77 = vst.msk [vmem:[%s1 + $0x88] sm:$0xff] %vm59, %v25
  %78 = vst.msk [vmem:[%s1 + $0x90] sm:$0xff] %vm59, %v26
  %79 = vst.msk [vmem:[%s1 + $0x98] sm:$0xff] %vm59, %v27
  %80 = vst.msk [vmem:[%s1 + $0xa0] sm:$0xff] %vm59, %v28
  %81 = vst.msk [vmem:[%s1 + $0xa8] sm:$0xff] %vm59, %v29
  %82 = vst.msk [vmem:[%s1 + $0xb0] sm:$0xff] %vm59, %v30
  %83 = vst.msk [vmem:[%s1 + $0xb8] sm:$0xff] %vm59, %v31
  %84 = vst.msk [vmem:[%s1 + $0xc0] sm:$0xff] %vm59, %v32
  %85 = vst.msk [vmem:[%s1 + $0xc8] sm:$0xff] %vm59, %v33
  %86 = vst.msk [vmem:[%s1 + $0xd0] sm:$0xff] %vm59, %v34
  %87 = vst.msk [vmem:[%s1 + $0xd8] sm:$0xff] %vm59, %v35
  %88 = vst.msk [vmem:[%s1 + $0xe0] sm:$0xff] %vm59, %v36
  %89 = vst.msk [vmem:[%s1 + $0xe8] sm:$0xff] %vm59, %v37
  %90 = vst.msk [vmem:[%s1 + $0xf0] sm:$0xff] %vm59, %v38
  %91 = vst.msk [vmem:[%s1 + $0xf8] sm:$0xff] %vm59, %v39
  %92 = vst.msk [vmem:[%s1 + $0x100] sm:$0xff] %vm59, %v40
  %93 = vst.msk [vmem:[%s1 + $0x108] sm:$0xff] %vm59, %v41
  %94 = vst.msk [vmem:[%s1 + $0x110] sm:$0xff] %vm59, %v42
  %95 = vst.msk [vmem:[%s1 + $0x118] sm:$0xff] %vm59, %v43
  %96 = vst.msk [vmem:[%s1 + $0x120] sm:$0xff] %vm59, %v44
  %97 = vst.msk [vmem:[%s1 + $0x128] sm:$0xff] %vm59, %v45
  %98 = vst.msk [vmem:[%s1 + $0x130] sm:$0xff] %vm59, %v46
  %99 = vst.msk [vmem:[%s1 + $0x138] sm:$0xff] %vm59, %v47
  %100 = vst.msk [vmem:[%s1 + $0x140] sm:$0xff] %vm59, %v48
  %101 = vst.msk [vmem:[%s1 + $0x148] sm:$0xff] %vm59, %v49
  %102 = vst.msk [vmem:[%s1 + $0x150] sm:$0xff] %vm59, %v50
  %103 = vst.msk [vmem:[%s1 + $0x158] sm:$0xff] %vm59, %v51
  %104 = vst.msk [vmem:[%s1 + $0x160] sm:$0xff] %vm59, %v52
  %105 = vst.msk [vmem:[%s1 + $0x168] sm:$0xff] %vm59, %v53
  %106 = vst.msk [vmem:[%s1 + $0x170] sm:$0xff] %vm59, %v54
  %107 = vst.msk [vmem:[%s1 + $0x178] sm:$0xff] %vm59, %v55
  %108 = vst.msk [vmem:[%s1 + $0x180] sm:$0xff] %vm59, %v56
  %109 = vst.msk [vmem:[%s1 + $0x188] sm:$0xff] %vm59, %v57
  %110 = vst.msk [vmem:[%s1 + $0x190] sm:$0xff] %vm59, %v58
  // Predicated region
  $region6: #{tpu_custom_call.1} parent=0 // pred_check
    _
  $region7: #{tpu_custom_call.1} parent=0 // pred_check_branch
    %112 = sbr.rel (0) target = $region9
  $region8: #{tpu_custom_call.1} parent=0 // pred_region
    _
  $region9: #{tpu_custom_call.1} parent=0 // pred_fallthru
    _
  // Predicated region
  $region10: #{tpu_custom_call.1} parent=0 // pred_check
    _
  $region11: #{tpu_custom_call.1} parent=0 // pred_check_branch
    %114 = sbr.rel (0) target = $region13
  $region12: #{tpu_custom_call.1} parent=0 // pred_region
    _
  $region13: #{tpu_custom_call.1} parent=0 // pred_fallthru
    _

</llo_original>
